<compile_context>
chip_gen: v5e
topology: v5e:2x2
jax: 0.10.0
libtpu: 0.0.40
codegen_flags: <defaults>
</compile_context>

<pallas_src>
import jax
import jax.numpy as jnp
from jax.experimental import pallas as pl
from jax.experimental.pallas import tpu as pltpu  # noqa: F401  (TPU backend)


def conv1x1_hardsig_kernel(x_ref, w_ref, b_ref, o_ref):
    # x_ref: (Cin, M)        interior pixels; channel on sublanes, pixel on lanes
    # w_ref: (Cin, Cout, 1)  conv weight pre-scaled by 1/6, one column per ci
    # b_ref: (Cout, 1)       (bias + 3) / 6, broadcasts along lanes
    # o_ref: (Cout, M)       lane-dense output
    cout, m = o_ref.shape
    cin = x_ref.shape[0]

    acc = jnp.broadcast_to(b_ref[...], (cout, m))          # bias already folded
    for ci in range(cin):                                   # Cin=3, static unroll -> VPU FMAs
        x_row = jnp.broadcast_to(x_ref[ci:ci + 1, :], (cout, m))  # sublane bcast
        w_col = jnp.broadcast_to(w_ref[ci], (cout, m))            # lane bcast
        acc = acc + w_col * x_row

    # add(3) -> clamp_min(0) -> clamp_max(6) -> div(6) -> ReLU6 collapses to a
    # single clip to [0, 1] because the scale/shift were folded into w/b.
    o_ref[...] = jnp.clip(acc, 0.0, 1.0)


@jax.jit
def model_forward(x_nchw, w_oc_ic, bias_oc):
    """x_nchw: (N, Cin, H, W) f32; w_oc_ic: (Cout, Cin) f32; bias_oc: (Cout,) f32."""
    N, Cin, H, W = x_nchw.shape
    Cout = w_oc_ic.shape[0]
    Ho, Wo = H + 2, W + 2
    M = N * H * W

    # Fold the +3 and /6 of the elementwise chain into the conv parameters
    # (trace-time work on 8x3 / 8-element arrays).
    w_fold = (w_oc_ic.astype(jnp.float32) / 6.0)                       # (Cout, Cin)
    b_fold = ((bias_oc.astype(jnp.float32) + 3.0) / 6.0).reshape(Cout, 1)
    # Stack weight columns so the kernel indexes a (Cout, 1) tile per ci
    # without any in-kernel lane slicing.
    w_stack = jnp.transpose(w_fold, (1, 0)).reshape(Cin, Cout, 1)      # (Cin, Cout, 1)

    # Lane-dense (Cin, M): channels on sublanes, pixels on lanes.
    if N == 1:
        x_cm = x_nchw.reshape(Cin, M)                # pure reshape, no transpose/copy
    else:
        x_cm = jnp.transpose(x_nchw, (1, 0, 2, 3)).reshape(Cin, M)

    out_cm = pl.pallas_call(
        conv1x1_hardsig_kernel,
        out_shape=jax.ShapeDtypeStruct((Cout, M), jnp.float32),
        in_specs=[
            pl.BlockSpec((Cin, M), lambda: (0, 0)),
            pl.BlockSpec((Cin, Cout, 1), lambda: (0, 0, 0)),
            pl.BlockSpec((Cout, 1), lambda: (0, 0)),
        ],
        out_specs=pl.BlockSpec((Cout, M), lambda: (0, 0)),
    )(x_cm, w_stack, b_fold)

    # padding=1 with a 1x1 kernel: border pixels see only the bias, i.e. the
    # input-independent constant clip((b+3)/6, 0, 1) per channel.
    interior = out_cm.reshape(Cout, N, H, W)
    if N == 1:
        inner = interior.reshape(1, Cout, H, W)      # free reshape for N=1
    else:
        inner = jnp.transpose(interior, (1, 0, 2, 3))
    border = jnp.clip(b_fold, 0.0, 1.0).reshape(1, Cout, 1, 1)
    full = jnp.broadcast_to(border, (N, Cout, Ho, Wo))
    return full.at[:, :, 1:H + 1, 1:W + 1].set(inner)


if __name__ == "__main__":
    key = jax.random.PRNGKey(0)
    kx, kw, kb = jax.random.split(key, 3)

    # Small shapes consistent with the module: N=1, Cin=3, Cout=8, spatial=16.
    N, Cin, Cout, H, W = 1, 3, 8, 16, 16
    x = jax.random.normal(kx, (N, Cin, H, W), dtype=jnp.float32)
    # Deterministic synthetic Conv2d(3, 8, 1) parameters.
    w = jax.random.normal(kw, (Cout, Cin), dtype=jnp.float32) * 0.1
    b = jax.random.normal(kb, (Cout,), dtype=jnp.float32) * 0.1

    y = model_forward(x, w, b)
    jax.block_until_ready(y)

    # Sanity check against a pure-JAX reference of the original op chain.
    x_pad = jnp.pad(x, ((0, 0), (0, 0), (1, 1), (1, 1)))
    v1 = jnp.einsum('nchw,oc->nohw', x_pad, w) + b.reshape(1, Cout, 1, 1)
    v5 = jnp.clip(v1 + 3.0, 0.0, 6.0) / 6.0
    ref = jnp.clip(v5, 0.0, 6.0)  # ReLU6

    assert y.shape == (N, Cout, H + 2, W + 2), y.shape
    assert jnp.allclose(y, ref, atol=1e-5, rtol=1e-5), "mismatch vs reference"

    print("KERNEL_OK")
</pallas_src>

<mosaic_0001>
module attributes {stable_mosaic.version = 11 : i64} {
  func.func @conv1x1_hardsig_kernel(%arg0: memref<3x256xf32, #tpu.memory_space<vmem>>, %arg1: memref<3x8x1xf32, #tpu.memory_space<vmem>>, %arg2: memref<8x1xf32, #tpu.memory_space<vmem>>, %arg3: memref<8x256xf32, #tpu.memory_space<vmem>>) attributes {dimension_semantics = [], scalar_prefetch = 0 : i64, scratch_operands = 0 : i64, tpu.core_type = #tpu.core_type<tc>} {
    %c0 = arith.constant 0 : index
    %c0_0 = arith.constant 0 : index
    %0 = vector.load %arg2[%c0, %c0_0] : memref<8x1xf32, #tpu.memory_space<vmem>>, vector<8x1xf32>
    %1 = vector.shape_cast %0 : vector<8x1xf32> to vector<8x1xf32>
    %2 = vector.broadcast %1 : vector<8x1xf32> to vector<8x256xf32>
    %c0_1 = arith.constant 0 : index
    %c0_2 = arith.constant 0 : index
    %3 = vector.load %arg0[%c0_1, %c0_2] : memref<3x256xf32, #tpu.memory_space<vmem>>, vector<1x256xf32>
    %4 = vector.shape_cast %3 : vector<1x256xf32> to vector<1x256xf32>
    %5 = vector.broadcast %4 : vector<1x256xf32> to vector<8x256xf32>
    %c0_3 = arith.constant 0 : index
    %c0_4 = arith.constant 0 : index
    %c0_5 = arith.constant 0 : index
    %6 = vector.load %arg1[%c0_3, %c0_4, %c0_5] : memref<3x8x1xf32, #tpu.memory_space<vmem>>, vector<1x8x1xf32>
    %7 = vector.shape_cast %6 : vector<1x8x1xf32> to vector<8x1xf32>
    %8 = vector.shape_cast %7 : vector<8x1xf32> to vector<8x1xf32>
    %9 = vector.broadcast %8 : vector<8x1xf32> to vector<8x256xf32>
    %10 = arith.mulf %9, %5 : vector<8x256xf32>
    %11 = arith.addf %2, %10 : vector<8x256xf32>
    %c1 = arith.constant 1 : index
    %c0_6 = arith.constant 0 : index
    %12 = vector.load %arg0[%c1, %c0_6] : memref<3x256xf32, #tpu.memory_space<vmem>>, vector<1x256xf32>
    %13 = vector.shape_cast %12 : vector<1x256xf32> to vector<1x256xf32>
    %14 = vector.broadcast %13 : vector<1x256xf32> to vector<8x256xf32>
    %c1_7 = arith.constant 1 : index
    %c0_8 = arith.constant 0 : index
    %c0_9 = arith.constant 0 : index
    %15 = vector.load %arg1[%c1_7, %c0_8, %c0_9] : memref<3x8x1xf32, #tpu.memory_space<vmem>>, vector<1x8x1xf32>
    %16 = vector.shape_cast %15 : vector<1x8x1xf32> to vector<8x1xf32>
    %17 = vector.shape_cast %16 : vector<8x1xf32> to vector<8x1xf32>
    %18 = vector.broadcast %17 : vector<8x1xf32> to vector<8x256xf32>
    %19 = arith.mulf %18, %14 : vector<8x256xf32>
    %20 = arith.addf %11, %19 : vector<8x256xf32>
    %c2 = arith.constant 2 : index
    %c0_10 = arith.constant 0 : index
    %21 = vector.load %arg0[%c2, %c0_10] : memref<3x256xf32, #tpu.memory_space<vmem>>, vector<1x256xf32>
    %22 = vector.shape_cast %21 : vector<1x256xf32> to vector<1x256xf32>
    %23 = vector.broadcast %22 : vector<1x256xf32> to vector<8x256xf32>
    %c2_11 = arith.constant 2 : index
    %c0_12 = arith.constant 0 : index
    %c0_13 = arith.constant 0 : index
    %24 = vector.load %arg1[%c2_11, %c0_12, %c0_13] : memref<3x8x1xf32, #tpu.memory_space<vmem>>, vector<1x8x1xf32>
    %25 = vector.shape_cast %24 : vector<1x8x1xf32> to vector<8x1xf32>
    %26 = vector.shape_cast %25 : vector<8x1xf32> to vector<8x1xf32>
    %27 = vector.broadcast %26 : vector<8x1xf32> to vector<8x256xf32>
    %28 = arith.mulf %27, %23 : vector<8x256xf32>
    %29 = arith.addf %20, %28 : vector<8x256xf32>
    %cst = arith.constant 0.000000e+00 : f32
    %cst_14 = arith.constant 1.000000e+00 : f32
    %30 = vector.broadcast %cst : f32 to vector<8x256xf32>
    %31 = arith.maximumf %30, %29 : vector<8x256xf32>
    %32 = vector.broadcast %cst_14 : f32 to vector<8x256xf32>
    %33 = arith.minimumf %32, %31 : vector<8x256xf32>
    %c0_15 = arith.constant 0 : index
    %c0_16 = arith.constant 0 : index
    %34 = vector.load %arg3[%c0_15, %c0_16] : memref<8x256xf32, #tpu.memory_space<vmem>>, vector<8x256xf32>
    tpu.vector_store %arg3[%c0_15, %c0_16], %33 {strides = array<i32>} : memref<8x256xf32, #tpu.memory_space<vmem>>, vector<8x256xf32>,
    return
  }
}

</mosaic_0001>

<llo_original>
// kernel: model_forward.1
$region0: #{model_forward.1}
  #allocation0 [shape = 'u32[]', space=smem, size = 0x4, offset = 0x4, fixed_abs, tag = 'smem constant byte address 0x4 - core index']
  #allocation1 [shape = 'u32[72,128]{1,0:T(1,128)}', space=vmem, size = 0x9000, scoped, tag = 'internal scratch']
  %s0 = inlined_call_operand.vmem [shape: f32[3,256], index: 0, kind: input, shape index: {}]
  %s1 = inlined_call_operand.vmem [shape: f32[3,8,1], index: 1, kind: input, shape index: {}]
  %s2 = inlined_call_operand.vmem [shape: f32[8,1], index: 2, kind: input, shape index: {}]
  %s3 = inlined_call_operand.vmem [shape: f32[8,256], index: 3, kind: output, shape index: {}]
  %s4 = sld [smem:[#allocation0]]
  $region22: #{model_forward.1} parent=0
    _
  %s6 = ssub.s32 1, %s4
  %s7 = scalar_select 0, %s6, %s4
  // Predicated region
  $region2: #{model_forward.1} parent=0 // pred_check
    _
  $region3: #{model_forward.1} parent=0 // pred_check_branch
    %9 = sbr.rel (0) target = $region5
  $region4: #{model_forward.1} parent=0 // pred_region
    _
  $region5: #{model_forward.1} parent=0 // pred_fallthru
    _
  // Predicated region
  $region6: #{model_forward.1} parent=0 // pred_check
    _
  $region7: #{model_forward.1} parent=0 // pred_check_branch
    %11 = sbr.rel (0) target = $region9
  $region8: #{model_forward.1} parent=0 // pred_region
    _
  $region9: #{model_forward.1} parent=0 // pred_fallthru
    _
  // Predicated region
  $region10: #{model_forward.1} parent=0 // pred_check
    _
  $region11: #{model_forward.1} parent=0 // pred_check_branch
    %13 = sbr.rel (0) target = $region13
  $region12: #{model_forward.1} parent=0 // pred_region
    _
  $region13: #{model_forward.1} parent=0 // pred_fallthru
    _
  %v14 = vld [vmem:[%s2] sm:$0xff]
  %16 = vset.pattern.permute.xlu0 0
  %17 = vperm.xlu0 %16, %v14
  %v18 = vpop.permute.xlu0 %17
  %v20 = vld [vmem:[%s0] ss:$4 sm:$0x3]
  %v22 = vperm.slane %v20, 0
  %v23 = vperm.slane %v20, 1
  %v26 = vld [vmem:[%s1] sm:$0xff]
  %28 = vset.pattern.permute.xlu0 0
  %29 = vperm.xlu0 %28, %v26
  %v30 = vpop.permute.xlu0 %29
  %v32 = vmul.f32 %v30, %v22
  %v33 = vmul.f32 %v30, %v23
  %v34 = vadd.f32 %v18, %v32
  %v35 = vadd.f32 %v18, %v33
  %s36 = scalar_lea.vmem %s0, 1
  %v37 = vld [vmem:[%s36] ss:$4 sm:$0x3]
  %v39 = vperm.slane %v37, 0
  %v40 = vperm.slane %v37, 1
  %s43 = scalar_lea.vmem %s1, 8
  %v44 = vld [vmem:[%s43] sm:$0xff]
  %46 = vset.pattern.permute.xlu0 0
  %47 = vperm.xlu0 %46, %v44
  %v48 = vpop.permute.xlu0 %47
  %v50 = vmul.f32 %v48, %v39
  %v51 = vmul.f32 %v48, %v40
  %v52 = vadd.f32 %v34, %v50
  %v53 = vadd.f32 %v35, %v51
  %s54 = scalar_lea.vmem %s0, 2
  %v55 = vld [vmem:[%s54] ss:$4 sm:$0x3]
  %v57 = vperm.slane %v55, 0
  %v58 = vperm.slane %v55, 1
  %s61 = scalar_lea.vmem %s1, 16
  %v62 = vld [vmem:[%s61] sm:$0xff]
  %64 = vset.pattern.permute.xlu0 0
  %65 = vperm.xlu0 %64, %v62
  %v66 = vpop.permute.xlu0 %65
  %v68 = vmul.f32 %v66, %v57
  %v69 = vmul.f32 %v66, %v58
  %v70 = vadd.f32 %v52, %v68
  %v71 = vadd.f32 %v53, %v69
  %v72 = vmax.f32 %v70, 0.0
  %v73 = vmax.f32 %v71, 0.0
  %v74 = vmin.f32 %v72, 1.0
  %v75 = vmin.f32 %v73, 1.0
  %76 = vst [vmem:[%s3] sm:$0xff] %v74
  %77 = vst [vmem:[%s3 + $0x8] sm:$0xff] %v75
  // Predicated region
  $region14: #{model_forward.1} parent=0 // pred_check
    _
  $region15: #{model_forward.1} parent=0 // pred_check_branch
    %79 = sbr.rel (0) target = $region17
  $region16: #{model_forward.1} parent=0 // pred_region
    _
  $region17: #{model_forward.1} parent=0 // pred_fallthru
    _
  // Predicated region
  $region18: #{model_forward.1} parent=0 // pred_check
    _
  $region19: #{model_forward.1} parent=0 // pred_check_branch
    %81 = sbr.rel (0) target = $region21
  $region20: #{model_forward.1} parent=0 // pred_region
    _
  $region21: #{model_forward.1} parent=0 // pred_fallthru
    _

</llo_original>
